<compile_context>
chip_gen: v7x
topology: tpu7x:2x2x1
jax: 0.10.0
libtpu: 0.0.40
codegen_flags: <defaults>
</compile_context>

<pallas_src>
import jax
import jax.numpy as jnp
from jax.experimental import pallas as pl
from jax.experimental.pallas import tpu as pltpu


def _mlp_kernel(x_ref, w1_ref, b1w2_ref, b2_ref, o_ref):
    # fc1: natural (H, D) @ (D, TB) MXU matmul -> batch lives on the 128-lane axis.
    h = jnp.dot(w1_ref[...], x_ref[...],
                preferred_element_type=jnp.float32)          # (H, TB)

    bw = b1w2_ref[...]                                       # (H, 2): [:,0]=b1, [:,1]=w2
    b1_col = bw[:, 0:1]                                      # (H, 1)
    w2_col = bw[:, 1:2]                                      # (H, 1)

    # bias broadcast along lanes + ReLU (VPU)
    h = jnp.maximum(h + b1_col, 0.0)

    # fc2 as VPU multiply + sublane reduce (keeps the MXU out of a K=16, N=1 product)
    z = jnp.sum(h * w2_col, axis=0, keepdims=True) + b2_ref[0, 0]   # (1, TB)

    # Sigmoid on the EUP path; lane-dense (1, TB) store
    o_ref[...] = jax.nn.sigmoid(z)


def breast_cancer_nn_forward(x, w1, b1, w2, b2, *, block_b=4096):
    """x: (B, D) f32. PyTorch-layout params: w1 (16, D), b1 (16,), w2 (1, 16), b2 (1,)."""
    B, D = x.shape
    H = w1.shape[0]

    # Batch padded to a lane multiple (128) so the (1, tb) output row is lane-dense.
    b_pad_min = pl.cdiv(B, 128) * 128
    tb_cap = max(128, (block_b // 128) * 128)
    # Single grid step whenever the whole padded batch fits the per-step budget.
    tb = b_pad_min if b_pad_min <= tb_cap else tb_cap
    b_pad = pl.cdiv(B, tb) * tb
    grid = (b_pad // tb,)

    # Feature-major x (D, B_pad): matmul contracts the natural dims, batch on lanes.
    x_t = x.astype(jnp.float32).T                            # (D, B)
    if b_pad != B:
        x_t = jnp.pad(x_t, ((0, 0), (0, b_pad - B)))

    w1_f = w1.astype(jnp.float32)                            # (H, D)
    b1w2 = jnp.stack(
        [b1.astype(jnp.float32), w2.reshape(H).astype(jnp.float32)], axis=1
    )                                                        # (H, 2)
    b2_s = b2.reshape(1, 1).astype(jnp.float32)              # scalar, lives in SMEM

    # Megacore sharding only pays off with >= 2 parallel steps (large B).
    dim_sem = ("parallel",) if grid[0] >= 2 else ("arbitrary",)

    out_row = pl.pallas_call(
        _mlp_kernel,
        out_shape=jax.ShapeDtypeStruct((1, b_pad), jnp.float32),
        grid=grid,
        in_specs=[
            pl.BlockSpec((D, tb), lambda i: (0, i)),              # x tile, batch on lanes
            pl.BlockSpec((H, D), lambda i: (0, 0)),               # w1, VMEM-resident
            pl.BlockSpec((H, 2), lambda i: (0, 0)),               # [b1 | w2] columns
            pl.BlockSpec(memory_space=pltpu.MemorySpace.SMEM),    # b2 scalar
        ],
        out_specs=pl.BlockSpec((1, tb), lambda i: (0, i)),        # lane-dense row
        compiler_params=pltpu.CompilerParams(
            dimension_semantics=dim_sem,
        ),
    )(x_t, w1_f, b1w2, b2_s)

    return out_row[0, :B].reshape(B, 1)


if __name__ == "__main__":
    # Breast-cancer dataset style shapes: 569 samples x 30 features, hidden=16.
    B, D, H = 569, 30, 16
    key = jax.random.PRNGKey(0)
    kx, k1, k2, k3, k4 = jax.random.split(key, 5)

    x = jax.random.normal(kx, (B, D), dtype=jnp.float32)

    # nn.Linear default init: U(-1/sqrt(fan_in), +1/sqrt(fan_in)), PyTorch layout.
    bound1 = 1.0 / jnp.sqrt(float(D))
    bound2 = 1.0 / jnp.sqrt(float(H))
    w1 = jax.random.uniform(k1, (H, D), jnp.float32, -bound1, bound1)
    b1 = jax.random.uniform(k2, (H,), jnp.float32, -bound1, bound1)
    w2 = jax.random.uniform(k3, (1, H), jnp.float32, -bound2, bound2)
    b2 = jax.random.uniform(k4, (1,), jnp.float32, -bound2, bound2)

    out = breast_cancer_nn_forward(x, w1, b1, w2, b2)
    out = jax.block_until_ready(out)

    # Reference in plain JAX (PyTorch semantics: y = sigmoid(relu(x @ W1^T + b1) @ W2^T + b2)).
    ref = jax.nn.sigmoid(jnp.maximum(x @ w1.T + b1, 0.0) @ w2.T + b2)
    assert out.shape == (B, 1)
    assert jnp.allclose(out, ref, atol=2e-5, rtol=1e-5)
    print("KERNEL_OK")
</pallas_src>

<mosaic_0001>
module attributes {stable_mosaic.version = 11 : i64} {
  func.func @_mlp_kernel(%arg0: i32, %arg1: memref<30x640xf32, #tpu.memory_space<vmem>>, %arg2: memref<16x30xf32, #tpu.memory_space<vmem>>, %arg3: memref<16x2xf32, #tpu.memory_space<vmem>>, %arg4: memref<1x1xf32, #tpu.memory_space<smem>>, %arg5: memref<1x640xf32, #tpu.memory_space<vmem>>) attributes {dimension_semantics = [#tpu.dimension_semantics<arbitrary>], iteration_bounds = array<i64: 1>, scalar_prefetch = 0 : i64, scratch_operands = 0 : i64, tpu.core_type = #tpu.core_type<tc>, window_params = [{transform_indices = @transform_0, window_bounds = array<i64: 30, 640>}, {pipeline_mode = #tpu.pipeline_mode<synchronous>, transform_indices = @transform_1, window_bounds = array<i64: 16, 30>}, {pipeline_mode = #tpu.pipeline_mode<synchronous>, transform_indices = @transform_2, window_bounds = array<i64: 16, 2>}, {transform_indices = @transform_3, window_bounds = array<i64: 1, 1>}, {transform_indices = @transform_4, window_bounds = array<i64: 1, 640>}]} {
    %c0 = arith.constant 0 : index
    %c0_0 = arith.constant 0 : index
    %0 = vector.load %arg2[%c0, %c0_0] : memref<16x30xf32, #tpu.memory_space<vmem>>, vector<16x30xf32>
    %c0_1 = arith.constant 0 : index
    %c0_2 = arith.constant 0 : index
    %1 = vector.load %arg1[%c0_1, %c0_2] : memref<30x640xf32, #tpu.memory_space<vmem>>, vector<30x640xf32>
    %cst = arith.constant dense<0.000000e+00> : vector<16x640xf32>
    %2 = tpu.matmul %0, %1, %cst {dimension_numbers = #tpu.dot_dimension_numbers<[1], [0], [0], [1], [0, 0, 1, 1], [], []>} : vector<16x30xf32>, vector<30x640xf32>, vector<16x640xf32> -> vector<16x640xf32>
    %c0_3 = arith.constant 0 : index
    %c0_4 = arith.constant 0 : index
    %3 = vector.load %arg3[%c0_3, %c0_4] : memref<16x2xf32, #tpu.memory_space<vmem>>, vector<16x2xf32>
    %4 = vector.extract_strided_slice %3 {offsets = [0, 0], sizes = [16, 1], strides = [1, 1]} : vector<16x2xf32> to vector<16x1xf32>
    %5 = vector.extract_strided_slice %3 {offsets = [0, 1], sizes = [16, 1], strides = [1, 1]} : vector<16x2xf32> to vector<16x1xf32>
    %6 = vector.broadcast %4 : vector<16x1xf32> to vector<16x640xf32>
    %7 = arith.addf %2, %6 : vector<16x640xf32>
    %cst_5 = arith.constant 0.000000e+00 : f32
    %8 = vector.broadcast %cst_5 : f32 to vector<16x640xf32>
    %9 = arith.maximumf %7, %8 : vector<16x640xf32>
    %10 = vector.broadcast %5 : vector<16x1xf32> to vector<16x640xf32>
    %11 = arith.mulf %9, %10 : vector<16x640xf32>
    %cst_6 = arith.constant dense<0.000000e+00> : vector<640xf32>
    %12 = vector.multi_reduction <add>, %11, %cst_6 [0] : vector<16x640xf32> to vector<640xf32>
    %13 = vector.shape_cast %12 : vector<640xf32> to vector<1x640xf32>
    %c0_7 = arith.constant 0 : index
    %c0_8 = arith.constant 0 : index
    %14 = memref.load %arg4[%c0_7, %c0_8] : memref<1x1xf32, #tpu.memory_space<smem>>
    %15 = vector.broadcast %14 : f32 to vector<1x640xf32>
    %16 = arith.addf %13, %15 : vector<1x640xf32>
    %17 = arith.negf %16 : vector<1x640xf32>
    %18 = math.exp %17 : vector<1x640xf32>
    %cst_9 = arith.constant 1.000000e+00 : f32
    %19 = vector.broadcast %cst_9 : f32 to vector<1x640xf32>
    %20 = arith.addf %19, %18 : vector<1x640xf32>
    %21 = arith.divf %19, %20 : vector<1x640xf32>
    %c0_10 = arith.constant 0 : index
    %c0_11 = arith.constant 0 : index
    %22 = vector.load %arg5[%c0_10, %c0_11] : memref<1x640xf32, #tpu.memory_space<vmem>>, vector<1x640xf32>
    tpu.vector_store %arg5[%c0_10, %c0_11], %21 {strides = array<i32>} : memref<1x640xf32, #tpu.memory_space<vmem>>, vector<1x640xf32>,
    return
  }
  func.func @transform_0(%arg0: i32) -> (i32, i32) {
    %c0_i32 = arith.constant 0 : i32
    %c0_i32_0 = arith.constant 0 : i32
    return %c0_i32, %arg0 : i32, i32
  }
  func.func @transform_1(%arg0: i32) -> (i32, i32) {
    %c0_i32 = arith.constant 0 : i32
    %c0_i32_0 = arith.constant 0 : i32
    %c0_i32_1 = arith.constant 0 : i32
    return %c0_i32, %c0_i32_0 : i32, i32
  }
  func.func @transform_2(%arg0: i32) -> (i32, i32) {
    %c0_i32 = arith.constant 0 : i32
    %c0_i32_0 = arith.constant 0 : i32
    %c0_i32_1 = arith.constant 0 : i32
    return %c0_i32, %c0_i32_0 : i32, i32
  }
  func.func @transform_3(%arg0: i32) -> (i32, i32) {
    %c0_i32 = arith.constant 0 : i32
    %c0_i32_0 = arith.constant 0 : i32
    %c0_i32_1 = arith.constant 0 : i32
    return %c0_i32, %c0_i32_0 : i32, i32
  }
  func.func @transform_4(%arg0: i32) -> (i32, i32) {
    %c0_i32 = arith.constant 0 : i32
    %c0_i32_0 = arith.constant 0 : i32
    return %c0_i32, %arg0 : i32, i32
  }
}

</mosaic_0001>

<llo_original>
// kernel: tpu_custom_call.1
$region0: #{tpu_custom_call.1}
  #allocation0 [shape = 'u32[]', space=smem, size = 0x4, offset = 0x4, fixed_abs, tag = 'smem constant byte address 0x4 - core index']
  #allocation1 [shape = 'u32[144,128]{1,0:T(1,128)}', space=vmem, size = 0x12000, scoped, tag = 'internal scratch']
  #allocation2 [shape = 'f32[1,1]{1,0:T(1,128)S(6)}', space=smem, size = 0x200, scoped, tag = 'scoped memory for tpu_custom_call.1']
  %s0 = inlined_call_operand.hbm [shape: f32[30,640], index: 0, kind: input, shape index: {}]
  %s1 = inlined_call_operand.vmem [shape: f32[16,30], index: 1, kind: input, shape index: {}]
  %s2 = inlined_call_operand.vmem [shape: f32[16,2], index: 2, kind: input, shape index: {}]
  %s3 = inlined_call_operand.<no memory space> [shape: f32[1,1], index: 3, kind: input, shape index: {}]
  %s4 = inlined_call_operand.hbm [shape: f32[1,640], index: 4, kind: output, shape index: {}]
  %s5 = sld [smem:[#allocation0]]
  $region30: #{tpu_custom_call.1} parent=0
    _
  %s7 = ssub.s32 1, %s5
  %s8 = scalar_select 0, %s7, %s5
  %9 = sst [smem:[#allocation2]] %s3
  $region1: #{tpu_custom_call.1} parent=0
    #allocation3 [shape = 'u8[81920]{0}', space=vmem, size = 0x14000, scoped, tag = 'input window, operand 0, single buffered']
    #allocation4 [shape = 's32[1]{0}', space=sflag, size = 0x4, scoped, tag = 'scoped memory for tpu_custom_call.1']
    #allocation5 [shape = 's32[1]{0}', space=sflag, size = 0x4, scoped, tag = 'scoped memory for tpu_custom_call.1']
    #allocation6 [shape = 'u8[2560]{0}', space=vmem, size = 0xc00, scoped, tag = 'output window, operand 0, single buffered']
    %10 = vsyncpa [#allocation4], 0
    %11 = vsyncpa [#allocation5], 0
    // Predicated region
    $region2: #{tpu_custom_call.1} parent=1 // pred_check
      _
    $region3: #{tpu_custom_call.1} parent=1 // pred_check_branch
      %13 = sbr.rel (0) target = $region5
    $region4: #{tpu_custom_call.1} parent=1 // pred_region
      %s15 = ssub.s32 2560, 2560
      %16 = vsyncadd [#allocation4], %s15
      %s17 = sshll.u32 [#allocation3], 4
      %s18 = int_to_ptr.vmem [resolvable:$true] %s17
      %23 = dma.hbm_to_vmem [thread:$0]  %s0, 2560, %s18, [#allocation4], 640, 640, 40
    $region5: #{tpu_custom_call.1} parent=1 // pred_fallthru
      _
    // Predicated region
    $region6: #{tpu_custom_call.1} parent=1 // pred_check
      _
    $region7: #{tpu_custom_call.1} parent=1 // pred_check_branch
      %25 = sbr.rel (0) target = $region9
    $region8: #{tpu_custom_call.1} parent=1 // pred_region
      _
    $region9: #{tpu_custom_call.1} parent=1 // pred_fallthru
      _
    // Predicated region
    $region10: #{tpu_custom_call.1} parent=1 // pred_check
      _
    $region11: #{tpu_custom_call.1} parent=1 // pred_check_branch
      %27 = sbr.rel (0) target = $region13
    $region12: #{tpu_custom_call.1} parent=1 // pred_region
      _
    $region13: #{tpu_custom_call.1} parent=1 // pred_fallthru
      _
    // Predicated region
    $region14: #{tpu_custom_call.1} parent=1 // pred_check
      _
    $region15: #{tpu_custom_call.1} parent=1 // pred_check_branch
      %29 = sbr.rel (0) target = $region17
    $region16: #{tpu_custom_call.1} parent=1 // pred_region
      _
    $region17: #{tpu_custom_call.1} parent=1 // pred_fallthru
      _
    // Predicated region
    $region18: #{tpu_custom_call.1} parent=1 // pred_check
      _
    $region19: #{tpu_custom_call.1} parent=1 // pred_check_branch
      %31 = sbr.rel (0) target = $region21
    $region20: #{tpu_custom_call.1} parent=1 // pred_region
      %32 = dma.done [#allocation4], 2560
    $region21: #{tpu_custom_call.1} parent=1 // pred_fallthru
      _
    %v33 = vld [vmem:[%s1] sm:$0xff]
    %v34 = vld [vmem:[%s1 + $0x8] sm:$0xff]
    %v35 = vld [vmem:[#allocation3] sm:$0xff]
    %v36 = vld [vmem:[#allocation3 + $0x8] sm:$0xff]
    %v37 = vld [vmem:[#allocation3 + $0x10] sm:$0xff]
    %v38 = vld [vmem:[#allocation3 + $0x18] sm:$0xff]
    %v39 = vld [vmem:[#allocation3 + $0x20] sm:$0xff]
    %v40 = vld [vmem:[#allocation3 + $0x28] sm:$0xff]
    %v41 = vld [vmem:[#allocation3 + $0x30] sm:$0xff]
    %v42 = vld [vmem:[#allocation3 + $0x38] sm:$0xff]
    %v43 = vld [vmem:[#allocation3 + $0x40] sm:$0xff]
    %v44 = vld [vmem:[#allocation3 + $0x48] sm:$0xff]
    %v45 = vld [vmem:[#allocation3 + $0x50] sm:$0xff]
    %v46 = vld [vmem:[#allocation3 + $0x58] sm:$0xff]
    %v47 = vld [vmem:[#allocation3 + $0x60] sm:$0xff]
    %v48 = vld [vmem:[#allocation3 + $0x68] sm:$0xff]
    %v49 = vld [vmem:[#allocation3 + $0x70] sm:$0xff]
    %v50 = vld [vmem:[#allocation3 + $0x78] sm:$0x3f]
    %v51 = vld [vmem:[#allocation3 + $0x80] sm:$0x3f]
    %v52 = vld [vmem:[#allocation3 + $0x88] sm:$0x3f]
    %v53 = vld [vmem:[#allocation3 + $0x90] sm:$0x3f]
    %v54 = vld [vmem:[#allocation3 + $0x98] sm:$0x3f]
    %v55 = vld [vmem:[%s2] sm:$0xff]
    %v56 = vld [vmem:[%s2 + $0x8] sm:$0xff]
    %58 = vset.pattern.permute.xlu0 0
    %59 = vperm.xlu0 %58, %v55
    %v60 = vpop.permute.xlu0 %59
    %63 = vset.pattern.permute.xlu0 0
    %64 = vperm.xlu0 %63, %v56
    %v65 = vpop.permute.xlu0 %64
    %vm67 = vcmask 244736
    %v69 = vsel %vm67, %v33, 0
    %v72 = vsel %vm67, %v34, 0
    %vm74 = vcmask 1045504
    %v76 = vsel %vm74, %v50, 0
    %v79 = vsel %vm74, %v51, 0
    %v82 = vsel %vm74, %v52, 0
    %v85 = vsel %vm74, %v53, 0
    %v88 = vsel %vm74, %v54, 0
    %90 = vmatprep.subr.mxu0 %v36
    %91 = vmatpush1.msra.mxu0 %v35
    %92 = vmatprep.subr.mxu0 %v41
    %93 = vmatpush1.msra.mxu0 %v40
    %94 = vmatprep.subr.mxu0 %v46
    %95 = vmatpush1.msra.mxu0 %v45
    %96 = vmatprep.subr.mxu0 %v79
    %97 = vmatpush1.msra.mxu0 %v76
    %98 = vmatprep.subr.mxu0 0.0
    %99 = vmatpush1.msra.mxu0 0.0
    %100 = vmatprep.subr.mxu0 0.0
    %101 = vmatpush1.msra.mxu0 0.0
    %102 = vmatprep.subr.mxu0 0.0
    %103 = vmatpush1.msra.mxu0 0.0
    %104 = vmatprep.subr.mxu0 0.0
    %105 = vmatpush1.msra.mxu0 0.0
    %106 = vmatprep.subr.mxu0 0.0
    %107 = vmatpush1.msra.mxu0 0.0
    %108 = vmatprep.subr.mxu0 0.0
    %109 = vmatpush1.msra.mxu0 0.0
    %110 = vmatprep.subr.mxu0 0.0
    %111 = vmatpush1.msra.mxu0 0.0
    %112 = vmatprep.subr.mxu0 0.0
    %113 = vmatpush1.msra.mxu0 0.0
    %114 = vmatprep.subr.mxu0 0.0
    %115 = vmatpush1.msra.mxu0 0.0
    %116 = vmatprep.subr.mxu0 0.0
    %117 = vmatpush1.msra.mxu0 0.0
    %118 = vmatprep.subr.mxu0 0.0
    %119 = vmatpush1.msra.mxu0 0.0
    %120 = vmatprep.subr.mxu0 0.0
    %121 = vmatpush1.msra.mxu0 0.0
    %122 = vmatprep.subr.mxu0 0.0
    %123 = vmatpush1.msra.mxu0 0.0
    %124 = vmatprep.subr.mxu0 0.0
    %125 = vmatpush1.msra.mxu0 0.0
    %126 = vmatprep.subr.mxu0 0.0
    %127 = vmatpush1.msra.mxu0 0.0
    %128 = vmatprep.subr.mxu0 0.0
    %129 = vmatpush1.msra.mxu0 0.0
    %130 = vmatprep.subr.mxu0 0.0
    %131 = vmatpush1.msra.mxu0 0.0
    %132 = vmatprep.subr.mxu0 0.0
    %133 = vmatpush1.msra.mxu0 0.0
    %134 = vmatprep.subr.mxu0 0.0
    %135 = vmatpush1.msra.mxu0 0.0
    %136 = vmatprep.subr.mxu0 0.0
    %137 = vmatpush1.msra.mxu0 0.0
    %138 = vmatprep.subr.mxu0 0.0
    %139 = vmatpush1.msra.mxu0 0.0
    %140 = vmatprep.subr.mxu0 0.0
    %141 = vmatpush1.msra.mxu0 0.0
    %142 = vmatprep.subr.mxu0 0.0
    %143 = vmatpush1.msra.mxu0 0.0
    %144 = vmatprep.subr.mxu0 0.0
    %145 = vmatpush1.msra.mxu0 0.0
    %146 = vmatprep.subr.mxu0 0.0
    %147 = vmatpush1.msra.mxu0 0.0
    %148 = vmatprep.subr.mxu0 0.0
    %149 = vmatpush1.msra.mxu0 0.0
    %150 = vmatprep.subr.mxu0 0.0
    %151 = vmatpush1.msra.mxu0 0.0
    %152 = vmatprep.subr.mxu0 0.0
    %153 = vmatpush1.msra.mxu0 0.0
    %154 = vmatprep.mubr.f32.mxu0 0.0
    %155 = vmatmul.mubr.f32.gmra.mrb[0].mxu0 %v69
    %v156 = vpop.f32.mrb[0].mxu0
    %v157 = vadd.f32 %v60, %v156
    %v158 = vpop.f32.mrb[0].mxu0
    %v159 = vadd.f32 %v60, %v158
    %160 = vmatprep.mubr.f32.mxu0 0.0
    %161 = vmatmul.mubr.f32.gmra.mrb[0].mxu0 %v72
    %v162 = vpop.f32.mrb[0].mxu0
    %v163 = vadd.f32 %v65, %v162
    %v164 = vpop.f32.mrb[0].mxu0
    %v165 = vadd.f32 %v65, %v164
    %166 = vdwg.mxu0
    %167 = vmatprep.subr.mxu0 %v38
    %168 = vmatpush1.msra.mxu0 %v37
    %169 = vmatprep.subr.mxu0 %v43
    %170 = vmatpush1.msra.mxu0 %v42
    %171 = vmatprep.subr.mxu0 %v48
    %172 = vmatpush1.msra.mxu0 %v47
    %173 = vmatprep.subr.mxu0 %v85
    %174 = vmatpush1.msra.mxu0 %v82
    %175 = vmatprep.subr.mxu0 0.0
    %176 = vmatpush1.msra.mxu0 0.0
    %177 = vmatprep.subr.mxu0 0.0
    %178 = vmatpush1.msra.mxu0 0.0
    %179 = vmatprep.subr.mxu0 0.0
    %180 = vmatpush1.msra.mxu0 0.0
    %181 = vmatprep.subr.mxu0 0.0
    %182 = vmatpush1.msra.mxu0 0.0
    %183 = vmatprep.subr.mxu0 0.0
    %184 = vmatpush1.msra.mxu0 0.0
    %185 = vmatprep.subr.mxu0 0.0
    %186 = vmatpush1.msra.mxu0 0.0
    %187 = vmatprep.subr.mxu0 0.0
    %188 = vmatpush1.msra.mxu0 0.0
    %189 = vmatprep.subr.mxu0 0.0
    %190 = vmatpush1.msra.mxu0 0.0
    %191 = vmatprep.subr.mxu0 0.0
    %192 = vmatpush1.msra.mxu0 0.0
    %193 = vmatprep.subr.mxu0 0.0
    %194 = vmatpush1.msra.mxu0 0.0
    %195 = vmatprep.subr.mxu0 0.0
    %196 = vmatpush1.msra.mxu0 0.0
    %197 = vmatprep.subr.mxu0 0.0
    %198 = vmatpush1.msra.mxu0 0.0
    %199 = vmatprep.subr.mxu0 0.0
    %200 = vmatpush1.msra.mxu0 0.0
    %201 = vmatprep.subr.mxu0 0.0
    %202 = vmatpush1.msra.mxu0 0.0
    %203 = vmatprep.subr.mxu0 0.0
    %204 = vmatpush1.msra.mxu0 0.0
    %205 = vmatprep.subr.mxu0 0.0
    %206 = vmatpush1.msra.mxu0 0.0
    %207 = vmatprep.subr.mxu0 0.0
    %208 = vmatpush1.msra.mxu0 0.0
    %209 = vmatprep.subr.mxu0 0.0
    %210 = vmatpush1.msra.mxu0 0.0
    %211 = vmatprep.subr.mxu0 0.0
    %212 = vmatpush1.msra.mxu0 0.0
    %213 = vmatprep.subr.mxu0 0.0
    %214 = vmatpush1.msra.mxu0 0.0
    %215 = vmatprep.subr.mxu0 0.0
    %216 = vmatpush1.msra.mxu0 0.0
    %217 = vmatprep.subr.mxu0 0.0
    %218 = vmatpush1.msra.mxu0 0.0
    %219 = vmatprep.subr.mxu0 0.0
    %220 = vmatpush1.msra.mxu0 0.0
    %221 = vmatprep.subr.mxu0 0.0
    %222 = vmatpush1.msra.mxu0 0.0
    %223 = vmatprep.subr.mxu0 0.0
    %224 = vmatpush1.msra.mxu0 0.0
    %225 = vmatprep.subr.mxu0 0.0
    %226 = vmatpush1.msra.mxu0 0.0
    %227 = vmatprep.subr.mxu0 0.0
    %228 = vmatpush1.msra.mxu0 0.0
    %229 = vmatprep.subr.mxu0 0.0
    %230 = vmatpush1.msra.mxu0 0.0
    %231 = vmatprep.mubr.f32.mxu0 0.0
    %232 = vmatmul.mubr.f32.gmra.mrb[0].mxu0 %v69
    %v233 = vpop.f32.mrb[0].mxu0
    %v234 = vadd.f32 %v60, %v233
    %v235 = vpop.f32.mrb[0].mxu0
    %v236 = vadd.f32 %v60, %v235
    %237 = vmatprep.mubr.f32.mxu0 0.0
    %238 = vmatmul.mubr.f32.gmra.mrb[0].mxu0 %v72
    %v239 = vpop.f32.mrb[0].mxu0
    %v240 = vadd.f32 %v65, %v239
    %v241 = vpop.f32.mrb[0].mxu0
    %v242 = vadd.f32 %v65, %v241
    %243 = vdwg.mxu0
    %244 = vmatprep.subr.mxu0 0.0
    %245 = vmatpush1.msra.mxu0 %v39
    %246 = vmatprep.subr.mxu0 0.0
    %247 = vmatpush1.msra.mxu0 %v44
    %248 = vmatprep.subr.mxu0 0.0
    %249 = vmatpush1.msra.mxu0 %v49
    %250 = vmatprep.subr.mxu0 0.0
    %251 = vmatpush1.msra.mxu0 %v88
    %252 = vmatprep.subr.mxu0 0.0
    %253 = vmatpush1.msra.mxu0 0.0
    %254 = vmatprep.subr.mxu0 0.0
    %255 = vmatpush1.msra.mxu0 0.0
    %256 = vmatprep.subr.mxu0 0.0
    %257 = vmatpush1.msra.mxu0 0.0
    %258 = vmatprep.subr.mxu0 0.0
    %259 = vmatpush1.msra.mxu0 0.0
    %260 = vmatprep.subr.mxu0 0.0
    %261 = vmatpush1.msra.mxu0 0.0
    %262 = vmatprep.subr.mxu0 0.0
    %263 = vmatpush1.msra.mxu0 0.0
    %264 = vmatprep.subr.mxu0 0.0
    %265 = vmatpush1.msra.mxu0 0.0
    %266 = vmatprep.subr.mxu0 0.0
    %267 = vmatpush1.msra.mxu0 0.0
    %268 = vmatprep.subr.mxu0 0.0
    %269 = vmatpush1.msra.mxu0 0.0
    %270 = vmatprep.subr.mxu0 0.0
    %271 = vmatpush1.msra.mxu0 0.0
    %272 = vmatprep.subr.mxu0 0.0
    %273 = vmatpush1.msra.mxu0 0.0
    %274 = vmatprep.subr.mxu0 0.0
    %275 = vmatpush1.msra.mxu0 0.0
    %276 = vmatprep.subr.mxu0 0.0
    %277 = vmatpush1.msra.mxu0 0.0
    %278 = vmatprep.subr.mxu0 0.0
    %279 = vmatpush1.msra.mxu0 0.0
    %280 = vmatprep.subr.mxu0 0.0
    %281 = vmatpush1.msra.mxu0 0.0
    %282 = vmatprep.subr.mxu0 0.0
    %283 = vmatpush1.msra.mxu0 0.0
    %284 = vmatprep.subr.mxu0 0.0
    %285 = vmatpush1.msra.mxu0 0.0
    %286 = vmatprep.subr.mxu0 0.0
    %287 = vmatpush1.msra.mxu0 0.0
    %288 = vmatprep.subr.mxu0 0.0
    %289 = vmatpush1.msra.mxu0 0.0
    %290 = vmatprep.subr.mxu0 0.0
    %291 = vmatpush1.msra.mxu0 0.0
    %292 = vmatprep.subr.mxu0 0.0
    %293 = vmatpush1.msra.mxu0 0.0
    %294 = vmatprep.subr.mxu0 0.0
    %295 = vmatpush1.msra.mxu0 0.0
    %296 = vmatprep.subr.mxu0 0.0
    %297 = vmatpush1.msra.mxu0 0.0
    %298 = vmatprep.subr.mxu0 0.0
    %299 = vmatpush1.msra.mxu0 0.0
    %300 = vmatprep.subr.mxu0 0.0
    %301 = vmatpush1.msra.mxu0 0.0
    %302 = vmatprep.subr.mxu0 0.0
    %303 = vmatpush1.msra.mxu0 0.0
    %304 = vmatprep.subr.mxu0 0.0
    %305 = vmatpush1.msra.mxu0 0.0
    %306 = vmatprep.subr.mxu0 0.0
    %307 = vmatpush1.msra.mxu0 0.0
    %308 = vmatprep.mubr.f32.mxu0 0.0
    %309 = vmatmul.mubr.f32.gmra.mrb[0].mxu0 %v69
    %v310 = vpop.f32.mrb[0].mxu0
    %v311 = vadd.f32 %v60, %v310
    %v312 = vpop.f32.mrb[0].mxu0
    %313 = vmatprep.mubr.f32.mxu0 0.0
    %314 = vmatmul.mubr.f32.gmra.mrb[0].mxu0 %v72
    %v315 = vpop.f32.mrb[0].mxu0
    %v316 = vadd.f32 %v65, %v315
    %v317 = vpop.f32.mrb[0].mxu0
    %318 = vdwg.mxu0
    %v319 = vmax.f32 %v157, 0.0
    %v320 = vmax.f32 %v159, 0.0
    %v321 = vmax.f32 %v234, 0.0
    %v322 = vmax.f32 %v236, 0.0
    %v323 = vmax.f32 %v311, 0.0
    %v324 = vmax.f32 %v163, 0.0
    %v325 = vmax.f32 %v165, 0.0
    %v326 = vmax.f32 %v240, 0.0
    %v327 = vmax.f32 %v242, 0.0
    %v328 = vmax.f32 %v316, 0.0
    %329 = vset.pattern.permute.xlu0 1
    %330 = vperm.xlu0 %329, %v55
    %v331 = vpop.permute.xlu0 %330
    %333 = vset.pattern.permute.xlu0 1
    %334 = vperm.xlu0 %333, %v56
    %v335 = vpop.permute.xlu0 %334
    %v337 = vmul.f32 %v319, %v331
    %v338 = vmul.f32 %v320, %v331
    %v339 = vmul.f32 %v321, %v331
    %v340 = vmul.f32 %v322, %v331
    %v341 = vmul.f32 %v323, %v331
    %v342 = vmul.f32 %v324, %v335
    %v343 = vmul.f32 %v325, %v335
    %v344 = vmul.f32 %v326, %v335
    %v345 = vmul.f32 %v327, %v335
    %v346 = vmul.f32 %v328, %v335
    %v347 = vadd.f32 %v337, %v342
    %v348 = vrot.slane %v347, 4
    %v349 = vadd.f32 %v347, %v348
    %v350 = vrot.slane %v349, 2
    %v351 = vadd.f32 %v349, %v350
    %v352 = vrot.slane %v351, 1
    %v353 = vadd.f32 %v351, %v352
    %v354 = vadd.f32 %v338, %v343
    %v355 = vrot.slane %v354, 4
    %v356 = vadd.f32 %v354, %v355
    %v357 = vrot.slane %v356, 2
    %v358 = vadd.f32 %v356, %v357
    %v359 = vrot.slane %v358, 1
    %v360 = vadd.f32 %v358, %v359
    %v361 = vadd.f32 %v339, %v344
    %v362 = vrot.slane %v361, 4
    %v363 = vadd.f32 %v361, %v362
    %v364 = vrot.slane %v363, 2
    %v365 = vadd.f32 %v363, %v364
    %v366 = vrot.slane %v365, 1
    %v367 = vadd.f32 %v365, %v366
    %v368 = vadd.f32 %v340, %v345
    %v369 = vrot.slane %v368, 4
    %v370 = vadd.f32 %v368, %v369
    %v371 = vrot.slane %v370, 2
    %v372 = vadd.f32 %v370, %v371
    %v373 = vrot.slane %v372, 1
    %v374 = vadd.f32 %v372, %v373
    %v375 = vadd.f32 %v341, %v346
    %v376 = vrot.slane %v375, 4
    %v377 = vadd.f32 %v375, %v376
    %v378 = vrot.slane %v377, 2
    %v379 = vadd.f32 %v377, %v378
    %v380 = vrot.slane %v379, 1
    %v381 = vadd.f32 %v379, %v380
    %s382 = sld [smem:[#allocation2]]
    %v383 = vstv %s382
    %v384 = vadd.f32 %v353, %v383
    %v385 = vadd.f32 %v360, %v383
    %v386 = vadd.f32 %v367, %v383
    %v387 = vadd.f32 %v374, %v383
    %v388 = vadd.f32 %v381, %v383
    %v389 = vxor.u32 %v384, 2147483648
    %v390 = vxor.u32 %v385, 2147483648
    %v391 = vxor.u32 %v386, 2147483648
    %v392 = vxor.u32 %v387, 2147483648
    %v393 = vxor.u32 %v388, 2147483648
    %v394 = vmul.f32 %v389, 1.442695
    %v395 = vpow.pop %v394
    %v396 = vmul.f32 %v390, 1.442695
    %v397 = vpow.pop %v396
    %v398 = vmul.f32 %v391, 1.442695
    %v399 = vpow.pop %v398
    %v400 = vmul.f32 %v392, 1.442695
    %v401 = vpow.pop %v400
    %v402 = vmul.f32 %v393, 1.442695
    %v403 = vpow.pop %v402
    %v404 = vadd.f32 %v395, 1.0
    %v405 = vadd.f32 %v397, 1.0
    %v406 = vadd.f32 %v399, 1.0
    %v407 = vadd.f32 %v401, 1.0
    %v408 = vadd.f32 %v403, 1.0
    %v409 = vrcp.pop %v404
    %v410 = vmul.f32 1.0, %v409
    %v411 = vrcp.pop %v405
    %v412 = vmul.f32 1.0, %v411
    %v413 = vrcp.pop %v406
    %v414 = vmul.f32 1.0, %v413
    %v415 = vrcp.pop %v407
    %v416 = vmul.f32 1.0, %v415
    %v417 = vrcp.pop %v408
    %v418 = vmul.f32 1.0, %v417
    %v424 = vcombine.low %v410, %v412
    %v425 = vcombine.low %v414, %v416
    %v427 = vunpack.c.l.s4 1966171168
    %v428 = vunpack.c.0.s8 %v427
    %v429 = vlaneseq
    %v430 = vshrl.u32 %v429, 7
    %v431 = vsub.s32 %v428, %v430
    %v432 = vrot.slane %v424, %v431
    %v434 = vunpack.c.l.s4 1966171168
    %v435 = vunpack.c.0.s8 %v434
    %v436 = vlaneseq
    %v437 = vshrl.u32 %v436, 7
    %v438 = vsub.s32 %v435, %v437
    %v439 = vrot.slane %v425, %v438
    %v441 = vunpack.c.l.s4 1966171168
    %v442 = vunpack.c.0.s8 %v441
    %v443 = vlaneseq
    %v444 = vshrl.u32 %v443, 7
    %v445 = vsub.s32 %v442, %v444
    %v446 = vrot.slane %v418, %v445
    %v447 = vcombine.low %v432, %v439
    %v449 = vunpack.c.l.s4 1966171168
    %v450 = vunpack.c.0.s8 %v449
    %v451 = vlaneseq
    %v452 = vshrl.u32 %v451, 7
    %v453 = vsub.s32 %v450, %v452
    %v454 = vrot.slane %v447, %v453
    %v456 = vunpack.c.l.s4 1966171168
    %v457 = vunpack.c.0.s8 %v456
    %v458 = vlaneseq
    %v459 = vshrl.u32 %v458, 7
    %v460 = vsub.s32 %v457, %v459
    %v461 = vrot.slane %v446, %v460
    %v462 = vcombine.low %v454, %v461
    %v464 = vlaneseq
    %vm465 = vcmp.ge.s32.totalorder %v464, 0
    %vm466 = vcmp.lt.s32.totalorder %v464, 640
    %vm467 = vmand %vm465, %vm466
    %468 = vst.msk [vmem:[#allocation6] sm:$0x1f] %vm467, %v462
    // Predicated region
    $region22: #{tpu_custom_call.1} parent=1 // pred_check
      _
    $region23: #{tpu_custom_call.1} parent=1 // pred_check_branch
      %470 = sbr.rel (0) target = $region25
    $region24: #{tpu_custom_call.1} parent=1 // pred_region
      %s472 = ssub.s32 80, 80
      %473 = vsyncadd [#allocation5], %s472
      %s475 = sshll.u32 [#allocation6], 4
      %s476 = int_to_ptr.vmem [resolvable:$true] %s475
      %478 = dma.vmem_to_hbm [thread:$0]  %s476, 80, %s4, [#allocation5]
    $region25: #{tpu_custom_call.1} parent=1 // pred_fallthru
      _
    // Predicated region
    $region26: #{tpu_custom_call.1} parent=1 // pred_check
      _
    $region27: #{tpu_custom_call.1} parent=1 // pred_check_branch
      %480 = sbr.rel (0) target = $region29
    $region28: #{tpu_custom_call.1} parent=1 // pred_region
      %481 = dma.done [#allocation5], 80
    $region29: #{tpu_custom_call.1} parent=1 // pred_fallthru
      _
    %482 = vsyncpa [#allocation4], 1
    %483 = vsyncpa [#allocation5], 1

</llo_original>
